<compile_context>
chip_gen: v5e
topology: v5e:2x2
jax: 0.10.0
libtpu: 0.0.40
codegen_flags: <defaults>
</compile_context>

<pallas_src>
import functools

import jax
import jax.numpy as jnp
from jax import lax
from jax.experimental import pallas as pl
from jax.experimental.pallas import tpu as pltpu


# ----------------------------- activations ---------------------------------
def _act(x, name):
    if name == "ReLU":
        return jnp.maximum(x, 0.0)
    if name == "Tanh":
        return jnp.tanh(x)
    if name == "Sigmoid":
        return jax.nn.sigmoid(x)
    if name == "GELU":
        # tanh-approx GELU rides the EUP slot; switch to approximate=False to
        # bit-match PyTorch's default erf-based nn.GELU.
        return jax.nn.gelu(x, approximate=True)
    raise ValueError(f"unsupported activation: {name}")


# ------------------------------ fused kernel --------------------------------
def _fused_stack_kernel(x_ref, w_ref, b_ref, o_ref, *,
                        kernel_size, num_layers, activation, seq_len,
                        compute_dtype):
    """Whole layer stack on one (Bblk, Tp, C) block, computed channel-major.

    x_ref : (Bblk, Tp, C)   activation block, straight from the (B, T, C) array
    w_ref : (C, L*2*K)      depthwise weights, column (l*2 + s)*K + j
    b_ref : (C, L*2)        biases, column l*2 + s
    o_ref : (Bblk, Tp, C)   output block
    """
    Bblk, Tp, C = x_ref.shape

    # ---- load + in-kernel transpose to channel-major (Bblk*C, Tp) ----------
    # Time lands on lanes (128-wide), channels x batch on sublanes; the conv
    # taps become static lane rolls.  The 32-bit 2-D transposes run on the XLU
    # and replace the two full-HBM-round-trip transposes the old wrapper paid.
    rows = []
    for b in range(Bblk):
        xb = x_ref[b].astype(jnp.float32)                 # (Tp, C)
        rows.append(jnp.transpose(xb))                    # (C, Tp)
    y = rows[0] if Bblk == 1 else jnp.concatenate(rows, axis=0)
    y = y.astype(compute_dtype)                           # (Bblk*C, Tp)

    # ---- params: load + cast ONCE, replicate rows to (b*C + c) ordering ----
    W = w_ref[...].astype(compute_dtype)                  # (C, L*2*K)
    Bt = b_ref[...].astype(compute_dtype)                 # (C, L*2)
    if Bblk > 1:
        W = jnp.concatenate([W] * Bblk, axis=0)           # (Bblk*C, L*2*K)
        Bt = jnp.concatenate([Bt] * Bblk, axis=0)         # (Bblk*C, L*2)

    # ---- per-offset boundary masks, shared across stages (and layers) ------
    lane_t = lax.broadcasted_iota(jnp.int32, (1, Tp), 1)
    masks = {}

    def mask_for(off):
        if off not in masks:
            masks[off] = (lane_t + off >= 0) & (lane_t + off < seq_len)
        return masks[off]

    zero = jnp.zeros((), compute_dtype)

    def tap(v, off):
        # shifted[:, t] = v[:, t + off], zero where t + off is outside
        # [0, seq_len) (matches Conv1d zero padding; also keeps the padded
        # tail of Tp from leaking into valid positions).
        if off == 0:
            return v
        rolled = pltpu.roll(v, (-off) % Tp, axis=1)        # XLU lane rotate
        return jnp.where(mask_for(off), rolled, zero)

    def dwconv(v, layer, stage, dilation, padding):
        cidx = layer * 2 + stage
        base = cidx * kernel_size
        # out[:, t] = bias + sum_j w[j] * v[:, t + j*dilation - padding]
        # (keeping only the first T outputs reproduces the PyTorch block's
        #  `remove`-last-sample behaviour for even receptive fields)
        acc = W[:, base:base + 1] * tap(v, -padding)
        for j in range(1, kernel_size):
            acc = acc + W[:, base + j:base + j + 1] * tap(v, j * dilation - padding)
        return acc + Bt[:, cidx:cidx + 1]

    for l in range(num_layers):                            # static unroll (small L)
        d = 2 ** l
        padding = ((kernel_size - 1) * d + 1) // 2
        resid = y
        y = _act(dwconv(y, l, 0, d, padding), activation)
        y = _act(dwconv(y, l, 1, d, padding), activation)
        y = y + resid

    # ---- transpose back and store in the native (Bblk, Tp, C) layout -------
    for b in range(Bblk):
        yb = y[b * C:(b + 1) * C, :].astype(jnp.float32)   # (C, Tp)
        o_ref[b] = jnp.transpose(yb).astype(o_ref.dtype)   # (Tp, C)


# ------------------------------ wrapper --------------------------------------
def pack_params(params):
    """Pack per-layer depthwise params into two small channel-major matrices.

    params: list of (w1, b1, w2, b2) with w: (K, C), b: (C,)
    returns w_flat: (C, L*2*K)  column (l*2+s)*K + j == w[l][stage s][j, :]
            b_flat: (C, L*2)    column  l*2+s        == b[l][stage s]
    """
    L = len(params)
    K, C = params[0][0].shape
    w = jnp.stack([jnp.stack([w1, w2]) for (w1, _, w2, _) in params])   # (L,2,K,C)
    b = jnp.stack([jnp.stack([b1, b2]) for (_, b1, _, b2) in params])   # (L,2,C)
    w_flat = jnp.transpose(w, (3, 0, 1, 2)).reshape(C, L * 2 * K)
    b_flat = jnp.transpose(b, (2, 0, 1)).reshape(C, L * 2)
    return w_flat, b_flat


def _vmem_limit_bytes():
    # v5e/v6e have 128 MiB physical VMEM, v7x only 64 MiB; take ~3/4 of
    # whatever this chip has (conservative 64 MiB fallback).
    try:
        cap = getattr(pltpu.get_tpu_info(), "vmem_capacity_bytes", None)
        if cap:
            return int(min(cap * 3 // 4, 100 * 1024 * 1024))
    except Exception:
        pass
    return 64 * 1024 * 1024


def _pick_batch_block(B, per_batch_bytes, target_bytes=2 * 1024 * 1024):
    """Largest divisor of B whose block stays around `target_bytes`."""
    want = max(1, min(B, target_bytes // max(per_batch_bytes, 1)))
    best = 1
    for cand in range(1, B + 1):
        if B % cand == 0 and cand <= want:
            best = cand
    return best


@functools.partial(jax.jit,
                   static_argnames=("kernel_size", "activation", "compute_dtype"))
def depthwise_causal_convolution(x_btc, w_flat, b_flat, *, kernel_size,
                                 activation, compute_dtype=jnp.float32):
    """Full Depthwise_CausalConvolution forward.  x_btc: (B, T, C) -> (B, T, C)."""
    B, T, C = x_btc.shape
    num_layers = b_flat.shape[1] // 2
    assert w_flat.shape == (C, num_layers * 2 * kernel_size)
    assert (kernel_size - 1) * (2 ** (num_layers - 1)) < T, \
        "sequence shorter than the largest dilated tap"

    # Keep the in-kernel time (lane) axis a multiple of 128 so every vector op
    # is lane-dense; pad with zeros and slice the pad back off (no-op if T is
    # already a multiple of 128).
    Tp = ((T + 127) // 128) * 128
    x_p = x_btc if Tp == T else jnp.pad(x_btc, ((0, 0), (0, Tp - T), (0, 0)))

    # Block = whole (padded) sequence per batch element, with as many batch
    # elements per grid step as it takes to reach a few MiB.  max(C, 128)
    # accounts for lane padding of the (Tp, C) block in VMEM when C < 128.
    per_batch_bytes = Tp * max(C, 128) * jnp.dtype(x_btc.dtype).itemsize
    Bblk = _pick_batch_block(B, per_batch_bytes)
    # TODO(synk): for very long sequences on v7x, tile T with a static halo
    # instead of taking full Tp per block.

    kern = functools.partial(
        _fused_stack_kernel,
        kernel_size=kernel_size, num_layers=num_layers, activation=activation,
        seq_len=T, compute_dtype=compute_dtype)

    y_p = pl.pallas_call(
        kern,
        out_shape=jax.ShapeDtypeStruct((B, Tp, C), x_btc.dtype),
        grid=(B // Bblk,),
        in_specs=[
            pl.BlockSpec((Bblk, Tp, C), lambda i: (i, 0, 0)),
            # params: constant index_map -> fetched once, resident in VMEM
            pl.BlockSpec((C, num_layers * 2 * kernel_size), lambda i: (0, 0)),
            pl.BlockSpec((C, num_layers * 2), lambda i: (0, 0)),
        ],
        out_specs=pl.BlockSpec((Bblk, Tp, C), lambda i: (i, 0, 0)),
        # No input_output_aliases: the input is usually an undonated jit
        # parameter; forcing aliasing makes XLA insert a defensive copy
        # (an extra HBM round trip, exactly what this rewrite removes).
        compiler_params=pltpu.CompilerParams(
            dimension_semantics=("parallel",),
            vmem_limit_bytes=_vmem_limit_bytes()),
    )(x_p, w_flat, b_flat)

    return y_p if Tp == T else y_p[:, :T, :]


# --------------------------- pure-JAX reference -----------------------------
def _ref_dwconv1d(x_bct, w_kc, b_c, dilation, padding, T):
    C = x_bct.shape[1]
    rhs = jnp.transpose(w_kc, (1, 0))[:, None, :]         # (C, 1, K)
    y = lax.conv_general_dilated(
        x_bct, rhs, window_strides=(1,), padding=[(padding, padding)],
        rhs_dilation=(dilation,), feature_group_count=C,
        dimension_numbers=("NCH", "OIH", "NCH"))
    return y[:, :, :T] + b_c[None, :, None]


def ref_forward(x_btc, params, *, kernel_size, activation):
    x = jnp.transpose(x_btc, (0, 2, 1))                   # (B, C, T)
    T = x.shape[2]
    for i, (w1, b1, w2, b2) in enumerate(params):
        d = 2 ** i
        p = ((kernel_size - 1) * d + 1) // 2
        resid = x
        y = _act(_ref_dwconv1d(x, w1, b1, d, p, T), activation)
        y = _act(_ref_dwconv1d(y, w2, b2, d, p, T), activation)
        x = y + resid
    return jnp.transpose(x, (0, 2, 1))


# ----------------------------------- main -----------------------------------
if __name__ == "__main__":
    # Module hyperparameters (small, consistent with the PyTorch module).
    in_channels = 8
    kernel_size = 3
    num_layers = 2
    activation = "ReLU"

    # T multiple of 128 -> lane-dense time axis inside the kernel.
    B, T, C = 2, 128, in_channels

    root = jax.random.PRNGKey(0)
    kx, kp = jax.random.split(root)
    x = jax.random.normal(kx, (B, T, C), dtype=jnp.float32)

    # PyTorch-style uniform(-1/sqrt(fan_in), 1/sqrt(fan_in)); depthwise fan_in = K.
    bound = 1.0 / (kernel_size ** 0.5)
    params = []
    key = kp
    for _ in range(num_layers):
        key, k1, k2, k3, k4 = jax.random.split(key, 5)
        w1 = jax.random.uniform(k1, (kernel_size, C), jnp.float32, -bound, bound)
        b1 = jax.random.uniform(k2, (C,), jnp.float32, -bound, bound)
        w2 = jax.random.uniform(k3, (kernel_size, C), jnp.float32, -bound, bound)
        b2 = jax.random.uniform(k4, (C,), jnp.float32, -bound, bound)
        params.append((w1, b1, w2, b2))

    w_flat, b_flat = pack_params(params)

    out = depthwise_causal_convolution(
        x, w_flat, b_flat, kernel_size=kernel_size, activation=activation)
    out = jax.block_until_ready(out)

    ref = ref_forward(x, params, kernel_size=kernel_size, activation=activation)
    assert out.shape == (B, T, C)
    assert jnp.allclose(out, ref, atol=1e-5, rtol=1e-5), "mismatch vs reference"

    print("KERNEL_OK")
</pallas_src>

<mosaic_0001>
module attributes {stable_mosaic.version = 11 : i64} {
  func.func @_fused_stack_kernel(%arg0: i32, %arg1: memref<2x128x8xf32, #tpu.memory_space<vmem>>, %arg2: memref<8x12xf32, #tpu.memory_space<vmem>>, %arg3: memref<8x4xf32, #tpu.memory_space<vmem>>, %arg4: memref<2x128x8xf32, #tpu.memory_space<vmem>>) attributes {dimension_semantics = [#tpu.dimension_semantics<parallel>], iteration_bounds = array<i64: 1>, scalar_prefetch = 0 : i64, scratch_operands = 0 : i64, tpu.core_type = #tpu.core_type<tc>, window_params = [{transform_indices = @transform_0, window_bounds = array<i64: 2, 128, 8>}, {pipeline_mode = #tpu.pipeline_mode<synchronous>, transform_indices = @transform_1, window_bounds = array<i64: 8, 12>}, {pipeline_mode = #tpu.pipeline_mode<synchronous>, transform_indices = @transform_2, window_bounds = array<i64: 8, 4>}, {transform_indices = @transform_3, window_bounds = array<i64: 2, 128, 8>}]} {
    %c0 = arith.constant 0 : index
    %c0_0 = arith.constant 0 : index
    %c0_1 = arith.constant 0 : index
    %0 = vector.load %arg1[%c0, %c0_0, %c0_1] : memref<2x128x8xf32, #tpu.memory_space<vmem>>, vector<1x128x8xf32>
    %1 = vector.shape_cast %0 : vector<1x128x8xf32> to vector<128x8xf32>
    %2 = tpu.transpose %1, [1, 0] : vector<128x8xf32> -> vector<8x128xf32>
    %c1 = arith.constant 1 : index
    %c0_2 = arith.constant 0 : index
    %c0_3 = arith.constant 0 : index
    %3 = vector.load %arg1[%c1, %c0_2, %c0_3] : memref<2x128x8xf32, #tpu.memory_space<vmem>>, vector<1x128x8xf32>
    %4 = vector.shape_cast %3 : vector<1x128x8xf32> to vector<128x8xf32>
    %5 = tpu.transpose %4, [1, 0] : vector<128x8xf32> -> vector<8x128xf32>
    %6 = tpu.concatenate %2, %5 in 0 : vector<8x128xf32>, vector<8x128xf32> -> vector<16x128xf32>
    %c0_4 = arith.constant 0 : index
    %c0_5 = arith.constant 0 : index
    %7 = vector.load %arg2[%c0_4, %c0_5] : memref<8x12xf32, #tpu.memory_space<vmem>>, vector<8x12xf32>
    %c0_6 = arith.constant 0 : index
    %c0_7 = arith.constant 0 : index
    %8 = vector.load %arg3[%c0_6, %c0_7] : memref<8x4xf32, #tpu.memory_space<vmem>>, vector<8x4xf32>
    %9 = tpu.concatenate %7, %7 in 0 : vector<8x12xf32>, vector<8x12xf32> -> vector<16x12xf32>
    %10 = tpu.concatenate %8, %8 in 0 : vector<8x4xf32>, vector<8x4xf32> -> vector<16x4xf32>
    %11 = tpu.iota {dimensions = array<i32: 1>} : vector<1x128xi32>
    %12 = vector.extract_strided_slice %9 {offsets = [0, 0], sizes = [16, 1], strides = [1, 1]} : vector<16x12xf32> to vector<16x1xf32>
    %c1_i32 = arith.constant 1 : i32
    %13 = tpu.dynamic_rotate %6 by %c1_i32 dim 1 : vector<16x128xf32>, i32 -> vector<16x128xf32>
    %c-1_i32 = arith.constant -1 : i32
    %14 = vector.broadcast %c-1_i32 : i32 to vector<1x128xi32>
    %15 = arith.addi %11, %14 : vector<1x128xi32>
    %c0_i32 = arith.constant 0 : i32
    %16 = vector.broadcast %c0_i32 : i32 to vector<1x128xi32>
    %17 = arith.cmpi sge, %15, %16 : vector<1x128xi32>
    %c-1_i32_8 = arith.constant -1 : i32
    %18 = vector.broadcast %c-1_i32_8 : i32 to vector<1x128xi32>
    %19 = arith.addi %11, %18 : vector<1x128xi32>
    %c128_i32 = arith.constant 128 : i32
    %20 = vector.broadcast %c128_i32 : i32 to vector<1x128xi32>
    %21 = arith.cmpi slt, %19, %20 : vector<1x128xi32>
    %22 = arith.andi %17, %21 : vector<1x128xi1>
    %cst = arith.constant 0.000000e+00 : f32
    %23 = vector.shape_cast %22 : vector<1x128xi1> to vector<1x128xi1>
    %24 = vector.broadcast %23 : vector<1x128xi1> to vector<16x128xi1>
    %25 = vector.broadcast %cst : f32 to vector<16x128xf32>
    %26 = arith.select %24, %13, %25 : vector<16x128xi1>, vector<16x128xf32>
    %27 = vector.broadcast %12 : vector<16x1xf32> to vector<16x128xf32>
    %28 = arith.mulf %27, %26 : vector<16x128xf32>
    %29 = vector.extract_strided_slice %9 {offsets = [0, 1], sizes = [16, 1], strides = [1, 1]} : vector<16x12xf32> to vector<16x1xf32>
    %30 = vector.broadcast %29 : vector<16x1xf32> to vector<16x128xf32>
    %31 = arith.mulf %30, %6 : vector<16x128xf32>
    %32 = arith.addf %28, %31 : vector<16x128xf32>
    %33 = vector.extract_strided_slice %9 {offsets = [0, 2], sizes = [16, 1], strides = [1, 1]} : vector<16x12xf32> to vector<16x1xf32>
    %c127_i32 = arith.constant 127 : i32
    %34 = tpu.dynamic_rotate %6 by %c127_i32 dim 1 : vector<16x128xf32>, i32 -> vector<16x128xf32>
    %c1_i32_9 = arith.constant 1 : i32
    %35 = vector.broadcast %c1_i32_9 : i32 to vector<1x128xi32>
    %36 = arith.addi %11, %35 : vector<1x128xi32>
    %c0_i32_10 = arith.constant 0 : i32
    %37 = vector.broadcast %c0_i32_10 : i32 to vector<1x128xi32>
    %38 = arith.cmpi sge, %36, %37 : vector<1x128xi32>
    %c1_i32_11 = arith.constant 1 : i32
    %39 = vector.broadcast %c1_i32_11 : i32 to vector<1x128xi32>
    %40 = arith.addi %11, %39 : vector<1x128xi32>
    %c128_i32_12 = arith.constant 128 : i32
    %41 = vector.broadcast %c128_i32_12 : i32 to vector<1x128xi32>
    %42 = arith.cmpi slt, %40, %41 : vector<1x128xi32>
    %43 = arith.andi %38, %42 : vector<1x128xi1>
    %cst_13 = arith.constant 0.000000e+00 : f32
    %44 = vector.shape_cast %43 : vector<1x128xi1> to vector<1x128xi1>
    %45 = vector.broadcast %44 : vector<1x128xi1> to vector<16x128xi1>
    %46 = vector.broadcast %cst_13 : f32 to vector<16x128xf32>
    %47 = arith.select %45, %34, %46 : vector<16x128xi1>, vector<16x128xf32>
    %48 = vector.broadcast %33 : vector<16x1xf32> to vector<16x128xf32>
    %49 = arith.mulf %48, %47 : vector<16x128xf32>
    %50 = arith.addf %32, %49 : vector<16x128xf32>
    %51 = vector.extract_strided_slice %10 {offsets = [0, 0], sizes = [16, 1], strides = [1, 1]} : vector<16x4xf32> to vector<16x1xf32>
    %52 = vector.broadcast %51 : vector<16x1xf32> to vector<16x128xf32>
    %53 = arith.addf %50, %52 : vector<16x128xf32>
    %cst_14 = arith.constant 0.000000e+00 : f32
    %54 = vector.broadcast %cst_14 : f32 to vector<16x128xf32>
    %55 = arith.maximumf %53, %54 : vector<16x128xf32>
    %56 = vector.extract_strided_slice %9 {offsets = [0, 3], sizes = [16, 1], strides = [1, 1]} : vector<16x12xf32> to vector<16x1xf32>
    %c1_i32_15 = arith.constant 1 : i32
    %57 = tpu.dynamic_rotate %55 by %c1_i32_15 dim 1 : vector<16x128xf32>, i32 -> vector<16x128xf32>
    %cst_16 = arith.constant 0.000000e+00 : f32
    %58 = vector.shape_cast %22 : vector<1x128xi1> to vector<1x128xi1>
    %59 = vector.broadcast %58 : vector<1x128xi1> to vector<16x128xi1>
    %60 = vector.broadcast %cst_16 : f32 to vector<16x128xf32>
    %61 = arith.select %59, %57, %60 : vector<16x128xi1>, vector<16x128xf32>
    %62 = vector.broadcast %56 : vector<16x1xf32> to vector<16x128xf32>
    %63 = arith.mulf %62, %61 : vector<16x128xf32>
    %64 = vector.extract_strided_slice %9 {offsets = [0, 4], sizes = [16, 1], strides = [1, 1]} : vector<16x12xf32> to vector<16x1xf32>
    %65 = vector.broadcast %64 : vector<16x1xf32> to vector<16x128xf32>
    %66 = arith.mulf %65, %55 : vector<16x128xf32>
    %67 = arith.addf %63, %66 : vector<16x128xf32>
    %68 = vector.extract_strided_slice %9 {offsets = [0, 5], sizes = [16, 1], strides = [1, 1]} : vector<16x12xf32> to vector<16x1xf32>
    %c127_i32_17 = arith.constant 127 : i32
    %69 = tpu.dynamic_rotate %55 by %c127_i32_17 dim 1 : vector<16x128xf32>, i32 -> vector<16x128xf32>
    %cst_18 = arith.constant 0.000000e+00 : f32
    %70 = vector.shape_cast %43 : vector<1x128xi1> to vector<1x128xi1>
    %71 = vector.broadcast %70 : vector<1x128xi1> to vector<16x128xi1>
    %72 = vector.broadcast %cst_18 : f32 to vector<16x128xf32>
    %73 = arith.select %71, %69, %72 : vector<16x128xi1>, vector<16x128xf32>
    %74 = vector.broadcast %68 : vector<16x1xf32> to vector<16x128xf32>
    %75 = arith.mulf %74, %73 : vector<16x128xf32>
    %76 = arith.addf %67, %75 : vector<16x128xf32>
    %77 = vector.extract_strided_slice %10 {offsets = [0, 1], sizes = [16, 1], strides = [1, 1]} : vector<16x4xf32> to vector<16x1xf32>
    %78 = vector.broadcast %77 : vector<16x1xf32> to vector<16x128xf32>
    %79 = arith.addf %76, %78 : vector<16x128xf32>
    %cst_19 = arith.constant 0.000000e+00 : f32
    %80 = vector.broadcast %cst_19 : f32 to vector<16x128xf32>
    %81 = arith.maximumf %79, %80 : vector<16x128xf32>
    %82 = arith.addf %81, %6 : vector<16x128xf32>
    %83 = vector.extract_strided_slice %9 {offsets = [0, 6], sizes = [16, 1], strides = [1, 1]} : vector<16x12xf32> to vector<16x1xf32>
    %c2_i32 = arith.constant 2 : i32
    %84 = tpu.dynamic_rotate %82 by %c2_i32 dim 1 : vector<16x128xf32>, i32 -> vector<16x128xf32>
    %c-2_i32 = arith.constant -2 : i32
    %85 = vector.broadcast %c-2_i32 : i32 to vector<1x128xi32>
    %86 = arith.addi %11, %85 : vector<1x128xi32>
    %c0_i32_20 = arith.constant 0 : i32
    %87 = vector.broadcast %c0_i32_20 : i32 to vector<1x128xi32>
    %88 = arith.cmpi sge, %86, %87 : vector<1x128xi32>
    %c-2_i32_21 = arith.constant -2 : i32
    %89 = vector.broadcast %c-2_i32_21 : i32 to vector<1x128xi32>
    %90 = arith.addi %11, %89 : vector<1x128xi32>
    %c128_i32_22 = arith.constant 128 : i32
    %91 = vector.broadcast %c128_i32_22 : i32 to vector<1x128xi32>
    %92 = arith.cmpi slt, %90, %91 : vector<1x128xi32>
    %93 = arith.andi %88, %92 : vector<1x128xi1>
    %cst_23 = arith.constant 0.000000e+00 : f32
    %94 = vector.shape_cast %93 : vector<1x128xi1> to vector<1x128xi1>
    %95 = vector.broadcast %94 : vector<1x128xi1> to vector<16x128xi1>
    %96 = vector.broadcast %cst_23 : f32 to vector<16x128xf32>
    %97 = arith.select %95, %84, %96 : vector<16x128xi1>, vector<16x128xf32>
    %98 = vector.broadcast %83 : vector<16x1xf32> to vector<16x128xf32>
    %99 = arith.mulf %98, %97 : vector<16x128xf32>
    %100 = vector.extract_strided_slice %9 {offsets = [0, 7], sizes = [16, 1], strides = [1, 1]} : vector<16x12xf32> to vector<16x1xf32>
    %101 = vector.broadcast %100 : vector<16x1xf32> to vector<16x128xf32>
    %102 = arith.mulf %101, %82 : vector<16x128xf32>
    %103 = arith.addf %99, %102 : vector<16x128xf32>
    %104 = vector.extract_strided_slice %9 {offsets = [0, 8], sizes = [16, 1], strides = [1, 1]} : vector<16x12xf32> to vector<16x1xf32>
    %c126_i32 = arith.constant 126 : i32
    %105 = tpu.dynamic_rotate %82 by %c126_i32 dim 1 : vector<16x128xf32>, i32 -> vector<16x128xf32>
    %c2_i32_24 = arith.constant 2 : i32
    %106 = vector.broadcast %c2_i32_24 : i32 to vector<1x128xi32>
    %107 = arith.addi %11, %106 : vector<1x128xi32>
    %c0_i32_25 = arith.constant 0 : i32
    %108 = vector.broadcast %c0_i32_25 : i32 to vector<1x128xi32>
    %109 = arith.cmpi sge, %107, %108 : vector<1x128xi32>
    %c2_i32_26 = arith.constant 2 : i32
    %110 = vector.broadcast %c2_i32_26 : i32 to vector<1x128xi32>
    %111 = arith.addi %11, %110 : vector<1x128xi32>
    %c128_i32_27 = arith.constant 128 : i32
    %112 = vector.broadcast %c128_i32_27 : i32 to vector<1x128xi32>
    %113 = arith.cmpi slt, %111, %112 : vector<1x128xi32>
    %114 = arith.andi %109, %113 : vector<1x128xi1>
    %cst_28 = arith.constant 0.000000e+00 : f32
    %115 = vector.shape_cast %114 : vector<1x128xi1> to vector<1x128xi1>
    %116 = vector.broadcast %115 : vector<1x128xi1> to vector<16x128xi1>
    %117 = vector.broadcast %cst_28 : f32 to vector<16x128xf32>
    %118 = arith.select %116, %105, %117 : vector<16x128xi1>, vector<16x128xf32>
    %119 = vector.broadcast %104 : vector<16x1xf32> to vector<16x128xf32>
    %120 = arith.mulf %119, %118 : vector<16x128xf32>
    %121 = arith.addf %103, %120 : vector<16x128xf32>
    %122 = vector.extract_strided_slice %10 {offsets = [0, 2], sizes = [16, 1], strides = [1, 1]} : vector<16x4xf32> to vector<16x1xf32>
    %123 = vector.broadcast %122 : vector<16x1xf32> to vector<16x128xf32>
    %124 = arith.addf %121, %123 : vector<16x128xf32>
    %cst_29 = arith.constant 0.000000e+00 : f32
    %125 = vector.broadcast %cst_29 : f32 to vector<16x128xf32>
    %126 = arith.maximumf %124, %125 : vector<16x128xf32>
    %127 = vector.extract_strided_slice %9 {offsets = [0, 9], sizes = [16, 1], strides = [1, 1]} : vector<16x12xf32> to vector<16x1xf32>
    %c2_i32_30 = arith.constant 2 : i32
    %128 = tpu.dynamic_rotate %126 by %c2_i32_30 dim 1 : vector<16x128xf32>, i32 -> vector<16x128xf32>
    %cst_31 = arith.constant 0.000000e+00 : f32
    %129 = vector.shape_cast %93 : vector<1x128xi1> to vector<1x128xi1>
    %130 = vector.broadcast %129 : vector<1x128xi1> to vector<16x128xi1>
    %131 = vector.broadcast %cst_31 : f32 to vector<16x128xf32>
    %132 = arith.select %130, %128, %131 : vector<16x128xi1>, vector<16x128xf32>
    %133 = vector.broadcast %127 : vector<16x1xf32> to vector<16x128xf32>
    %134 = arith.mulf %133, %132 : vector<16x128xf32>
    %135 = vector.extract_strided_slice %9 {offsets = [0, 10], sizes = [16, 1], strides = [1, 1]} : vector<16x12xf32> to vector<16x1xf32>
    %136 = vector.broadcast %135 : vector<16x1xf32> to vector<16x128xf32>
    %137 = arith.mulf %136, %126 : vector<16x128xf32>
    %138 = arith.addf %134, %137 : vector<16x128xf32>
    %139 = vector.extract_strided_slice %9 {offsets = [0, 11], sizes = [16, 1], strides = [1, 1]} : vector<16x12xf32> to vector<16x1xf32>
    %c126_i32_32 = arith.constant 126 : i32
    %140 = tpu.dynamic_rotate %126 by %c126_i32_32 dim 1 : vector<16x128xf32>, i32 -> vector<16x128xf32>
    %cst_33 = arith.constant 0.000000e+00 : f32
    %141 = vector.shape_cast %114 : vector<1x128xi1> to vector<1x128xi1>
    %142 = vector.broadcast %141 : vector<1x128xi1> to vector<16x128xi1>
    %143 = vector.broadcast %cst_33 : f32 to vector<16x128xf32>
    %144 = arith.select %142, %140, %143 : vector<16x128xi1>, vector<16x128xf32>
    %145 = vector.broadcast %139 : vector<16x1xf32> to vector<16x128xf32>
    %146 = arith.mulf %145, %144 : vector<16x128xf32>
    %147 = arith.addf %138, %146 : vector<16x128xf32>
    %148 = vector.extract_strided_slice %10 {offsets = [0, 3], sizes = [16, 1], strides = [1, 1]} : vector<16x4xf32> to vector<16x1xf32>
    %149 = vector.broadcast %148 : vector<16x1xf32> to vector<16x128xf32>
    %150 = arith.addf %147, %149 : vector<16x128xf32>
    %cst_34 = arith.constant 0.000000e+00 : f32
    %151 = vector.broadcast %cst_34 : f32 to vector<16x128xf32>
    %152 = arith.maximumf %150, %151 : vector<16x128xf32>
    %153 = arith.addf %152, %82 : vector<16x128xf32>
    %154 = vector.extract_strided_slice %153 {offsets = [0, 0], sizes = [8, 128], strides = [1, 1]} : vector<16x128xf32> to vector<8x128xf32>
    %155 = tpu.transpose %154, [1, 0] : vector<8x128xf32> -> vector<128x8xf32>
    %c0_35 = arith.constant 0 : index
    %c0_36 = arith.constant 0 : index
    %c0_37 = arith.constant 0 : index
    %156 = vector.load %arg4[%c0_35, %c0_36, %c0_37] : memref<2x128x8xf32, #tpu.memory_space<vmem>>, vector<1x128x8xf32>
    %157 = vector.shape_cast %156 : vector<1x128x8xf32> to vector<128x8xf32>
    %158 = vector.shape_cast %155 : vector<128x8xf32> to vector<1x128x8xf32>
    tpu.vector_store %arg4[%c0_35, %c0_36, %c0_37], %158 {strides = array<i32>} : memref<2x128x8xf32, #tpu.memory_space<vmem>>, vector<1x128x8xf32>,
    %159 = vector.extract_strided_slice %153 {offsets = [8, 0], sizes = [8, 128], strides = [1, 1]} : vector<16x128xf32> to vector<8x128xf32>
    %160 = tpu.transpose %159, [1, 0] : vector<8x128xf32> -> vector<128x8xf32>
    %c1_38 = arith.constant 1 : index
    %c0_39 = arith.constant 0 : index
    %c0_40 = arith.constant 0 : index
    %161 = vector.load %arg4[%c1_38, %c0_39, %c0_40] : memref<2x128x8xf32, #tpu.memory_space<vmem>>, vector<1x128x8xf32>
    %162 = vector.shape_cast %161 : vector<1x128x8xf32> to vector<128x8xf32>
    %163 = vector.shape_cast %160 : vector<128x8xf32> to vector<1x128x8xf32>
    tpu.vector_store %arg4[%c1_38, %c0_39, %c0_40], %163 {strides = array<i32>} : memref<2x128x8xf32, #tpu.memory_space<vmem>>, vector<1x128x8xf32>,
    return
  }
  func.func @transform_0(%arg0: i32) -> (i32, i32, i32) {
    %c0_i32 = arith.constant 0 : i32
    %c0_i32_0 = arith.constant 0 : i32
    %c0_i32_1 = arith.constant 0 : i32
    return %arg0, %c0_i32, %c0_i32_0 : i32, i32, i32
  }
  func.func @transform_1(%arg0: i32) -> (i32, i32) {
    %c0_i32 = arith.constant 0 : i32
    %c0_i32_0 = arith.constant 0 : i32
    %c0_i32_1 = arith.constant 0 : i32
    return %c0_i32, %c0_i32_0 : i32, i32
  }
  func.func @transform_2(%arg0: i32) -> (i32, i32) {
    %c0_i32 = arith.constant 0 : i32
    %c0_i32_0 = arith.constant 0 : i32
    %c0_i32_1 = arith.constant 0 : i32
    return %c0_i32, %c0_i32_0 : i32, i32
  }
  func.func @transform_3(%arg0: i32) -> (i32, i32, i32) {
    %c0_i32 = arith.constant 0 : i32
    %c0_i32_0 = arith.constant 0 : i32
    %c0_i32_1 = arith.constant 0 : i32
    return %arg0, %c0_i32, %c0_i32_0 : i32, i32, i32
  }
}

</mosaic_0001>

<llo_original>
// kernel: depthwise_causal_convolution.1
$region0: #{depthwise_causal_convolution.1}
  #allocation0 [shape = 'u32[]', space=smem, size = 0x4, offset = 0x4, fixed_abs, tag = 'smem constant byte address 0x4 - core index']
  #allocation1 [shape = 'u32[72,128]{1,0:T(1,128)}', space=vmem, size = 0x9000, scoped, tag = 'internal scratch']
  %s0 = inlined_call_operand.vmem [shape: f32[2,128,8], index: 0, kind: input, shape index: {}]
  %s1 = inlined_call_operand.vmem [shape: f32[8,12], index: 1, kind: input, shape index: {}]
  %s2 = inlined_call_operand.vmem [shape: f32[8,4], index: 2, kind: input, shape index: {}]
  %s3 = inlined_call_operand.vmem [shape: f32[2,128,8], index: 3, kind: output, shape index: {}]
  %s4 = sld [smem:[#allocation0]]
  $region22: #{depthwise_causal_convolution.1} parent=0
    _
  %s6 = ssub.s32 1, %s4
  %s7 = scalar_select 0, %s6, %s4
  // Predicated region
  $region2: #{depthwise_causal_convolution.1} parent=0 // pred_check
    _
  $region3: #{depthwise_causal_convolution.1} parent=0 // pred_check_branch
    %9 = sbr.rel (0) target = $region5
  $region4: #{depthwise_causal_convolution.1} parent=0 // pred_region
    _
  $region5: #{depthwise_causal_convolution.1} parent=0 // pred_fallthru
    _
  // Predicated region
  $region6: #{depthwise_causal_convolution.1} parent=0 // pred_check
    _
  $region7: #{depthwise_causal_convolution.1} parent=0 // pred_check_branch
    %11 = sbr.rel (0) target = $region9
  $region8: #{depthwise_causal_convolution.1} parent=0 // pred_region
    _
  $region9: #{depthwise_causal_convolution.1} parent=0 // pred_fallthru
    _
  // Predicated region
  $region10: #{depthwise_causal_convolution.1} parent=0 // pred_check
    _
  $region11: #{depthwise_causal_convolution.1} parent=0 // pred_check_branch
    %13 = sbr.rel (0) target = $region13
  $region12: #{depthwise_causal_convolution.1} parent=0 // pred_region
    _
  $region13: #{depthwise_causal_convolution.1} parent=0 // pred_fallthru
    _
  %v14 = vld [vmem:[%s0] sm:$0xff]
  %v15 = vld [vmem:[%s0 + $0x8] sm:$0xff]
  %v16 = vld [vmem:[%s0 + $0x10] sm:$0xff]
  %v17 = vld [vmem:[%s0 + $0x18] sm:$0xff]
  %v18 = vld [vmem:[%s0 + $0x20] sm:$0xff]
  %v19 = vld [vmem:[%s0 + $0x28] sm:$0xff]
  %v20 = vld [vmem:[%s0 + $0x30] sm:$0xff]
  %v21 = vld [vmem:[%s0 + $0x38] sm:$0xff]
  %v22 = vld [vmem:[%s0 + $0x40] sm:$0xff]
  %v23 = vld [vmem:[%s0 + $0x48] sm:$0xff]
  %v24 = vld [vmem:[%s0 + $0x50] sm:$0xff]
  %v25 = vld [vmem:[%s0 + $0x58] sm:$0xff]
  %v26 = vld [vmem:[%s0 + $0x60] sm:$0xff]
  %v27 = vld [vmem:[%s0 + $0x68] sm:$0xff]
  %v28 = vld [vmem:[%s0 + $0x70] sm:$0xff]
  %v29 = vld [vmem:[%s0 + $0x78] sm:$0xff]
  %30 = vxpose.xlu0.b32.start [1/16] %v14, 128
  %31 = vxpose.xlu0.b32.cont [2/16] %v15, 128
  %32 = vxpose.xlu0.b32.cont [3/16] %v16, 128
  %33 = vxpose.xlu0.b32.cont [4/16] %v17, 128
  %34 = vxpose.xlu0.b32.cont [5/16] %v18, 128
  %35 = vxpose.xlu0.b32.cont [6/16] %v19, 128
  %36 = vxpose.xlu0.b32.cont [7/16] %v20, 128
  %37 = vxpose.xlu0.b32.cont [8/16] %v21, 128
  %38 = vxpose.xlu0.b32.cont [9/16] %v22, 128
  %39 = vxpose.xlu0.b32.cont [10/16] %v23, 128
  %40 = vxpose.xlu0.b32.cont [11/16] %v24, 128
  %41 = vxpose.xlu0.b32.cont [12/16] %v25, 128
  %42 = vxpose.xlu0.b32.cont [13/16] %v26, 128
  %43 = vxpose.xlu0.b32.cont [14/16] %v27, 128
  %44 = vxpose.xlu0.b32.cont [15/16] %v28, 128
  %45 = vxpose.xlu0.b32.end [16/16] %v29, 128
  %v46 = vpop.trf.xlu0
  %v47 = vpop.trf.xlu0
  %v48 = vpop.trf.xlu0
  %v49 = vpop.trf.xlu0
  %v50 = vpop.trf.xlu0
  %v51 = vpop.trf.xlu0
  %v52 = vpop.trf.xlu0
  %v53 = vpop.trf.xlu0
  %v54 = vpop.trf.xlu0
  %v55 = vpop.trf.xlu0
  %v56 = vpop.trf.xlu0
  %v57 = vpop.trf.xlu0
  %v58 = vpop.trf.xlu0
  %v59 = vpop.trf.xlu0
  %v60 = vpop.trf.xlu0
  %v61 = vpop.trf.xlu0
  %s62 = scalar_lea.vmem %s0, 128
  %v63 = vld [vmem:[%s62] sm:$0xff]
  %v64 = vld [vmem:[%s62 + $0x8] sm:$0xff]
  %v65 = vld [vmem:[%s62 + $0x10] sm:$0xff]
  %v66 = vld [vmem:[%s62 + $0x18] sm:$0xff]
  %v67 = vld [vmem:[%s62 + $0x20] sm:$0xff]
  %v68 = vld [vmem:[%s62 + $0x28] sm:$0xff]
  %v69 = vld [vmem:[%s62 + $0x30] sm:$0xff]
  %v70 = vld [vmem:[%s62 + $0x38] sm:$0xff]
  %v71 = vld [vmem:[%s62 + $0x40] sm:$0xff]
  %v72 = vld [vmem:[%s62 + $0x48] sm:$0xff]
  %v73 = vld [vmem:[%s62 + $0x50] sm:$0xff]
  %v74 = vld [vmem:[%s62 + $0x58] sm:$0xff]
  %v75 = vld [vmem:[%s62 + $0x60] sm:$0xff]
  %v76 = vld [vmem:[%s62 + $0x68] sm:$0xff]
  %v77 = vld [vmem:[%s62 + $0x70] sm:$0xff]
  %v78 = vld [vmem:[%s62 + $0x78] sm:$0xff]
  %79 = vxpose.xlu0.b32.start [1/16] %v63, 128
  %80 = vxpose.xlu0.b32.cont [2/16] %v64, 128
  %81 = vxpose.xlu0.b32.cont [3/16] %v65, 128
  %82 = vxpose.xlu0.b32.cont [4/16] %v66, 128
  %83 = vxpose.xlu0.b32.cont [5/16] %v67, 128
  %84 = vxpose.xlu0.b32.cont [6/16] %v68, 128
  %85 = vxpose.xlu0.b32.cont [7/16] %v69, 128
  %86 = vxpose.xlu0.b32.cont [8/16] %v70, 128
  %87 = vxpose.xlu0.b32.cont [9/16] %v71, 128
  %88 = vxpose.xlu0.b32.cont [10/16] %v72, 128
  %89 = vxpose.xlu0.b32.cont [11/16] %v73, 128
  %90 = vxpose.xlu0.b32.cont [12/16] %v74, 128
  %91 = vxpose.xlu0.b32.cont [13/16] %v75, 128
  %92 = vxpose.xlu0.b32.cont [14/16] %v76, 128
  %93 = vxpose.xlu0.b32.cont [15/16] %v77, 128
  %94 = vxpose.xlu0.b32.end [16/16] %v78, 128
  %v95 = vpop.trf.xlu0
  %v96 = vpop.trf.xlu0
  %v97 = vpop.trf.xlu0
  %v98 = vpop.trf.xlu0
  %v99 = vpop.trf.xlu0
  %v100 = vpop.trf.xlu0
  %v101 = vpop.trf.xlu0
  %v102 = vpop.trf.xlu0
  %v103 = vpop.trf.xlu0
  %v104 = vpop.trf.xlu0
  %v105 = vpop.trf.xlu0
  %v106 = vpop.trf.xlu0
  %v107 = vpop.trf.xlu0
  %v108 = vpop.trf.xlu0
  %v109 = vpop.trf.xlu0
  %v110 = vpop.trf.xlu0
  %v111 = vld [vmem:[%s1] sm:$0xff]
  %v112 = vld [vmem:[%s2] sm:$0xff]
  %v113 = vlaneseq
  %v114 = vand.u32 %v113, 127
  %115 = vrot.lane.b32.xlu0 %v46, 1
  %v116 = vpop.permute.xlu0 %115
  %117 = vrot.lane.b32.xlu0 %v95, 1
  %v118 = vpop.permute.xlu0 %117
  %v119 = vadd.s32 %v114, 4294967295
  %vm120 = vcmp.ge.s32.totalorder %v119, 0
  %vm121 = vcmp.lt.s32.totalorder %v119, 128
  %vm122 = vmand %vm120, %vm121
  %v123 = vsel %vm122, 1, 0
  %vm124 = vcmp.eq.s32.totalorder %v123, 1
  %v125 = vsel %vm124, %v116, 0.0
  %v126 = vsel %vm124, %v118, 0.0
  %128 = vset.pattern.permute.xlu0 0
  %129 = vperm.xlu0 %128, %v111
  %v130 = vpop.permute.xlu0 %129
  %v132 = vmul.f32 %v130, %v125
  %v133 = vmul.f32 %v130, %v126
  %134 = vset.pattern.permute.xlu0 1
  %135 = vperm.xlu0 %134, %v111
  %v136 = vpop.permute.xlu0 %135
  %v138 = vmul.f32 %v136, %v46
  %v139 = vmul.f32 %v136, %v95
  %v140 = vadd.f32 %v132, %v138
  %v141 = vadd.f32 %v133, %v139
  %142 = vrot.lane.b32.xlu0 %v46, 127
  %v143 = vpop.permute.xlu0 %142
  %144 = vrot.lane.b32.xlu0 %v95, 127
  %v145 = vpop.permute.xlu0 %144
  %v146 = vadd.s32 %v114, 1
  %vm147 = vcmp.ge.s32.totalorder %v146, 0
  %vm148 = vcmp.lt.s32.totalorder %v146, 128
  %vm149 = vmand %vm147, %vm148
  %v150 = vsel %vm149, 1, 0
  %vm151 = vcmp.eq.s32.totalorder %v150, 1
  %v152 = vsel %vm151, %v143, 0.0
  %v153 = vsel %vm151, %v145, 0.0
  %154 = vset.pattern.permute.xlu0 2
  %155 = vperm.xlu0 %154, %v111
  %v156 = vpop.permute.xlu0 %155
  %v158 = vmul.f32 %v156, %v152
  %v159 = vmul.f32 %v156, %v153
  %v160 = vadd.f32 %v140, %v158
  %v161 = vadd.f32 %v141, %v159
  %163 = vset.pattern.permute.xlu0 0
  %164 = vperm.xlu0 %163, %v112
  %v165 = vpop.permute.xlu0 %164
  %v167 = vadd.f32 %v160, %v165
  %v168 = vadd.f32 %v161, %v165
  %v169 = vmax.f32 %v167, 0.0
  %v170 = vmax.f32 %v168, 0.0
  %171 = vrot.lane.b32.xlu0 %v169, 1
  %v172 = vpop.permute.xlu0 %171
  %173 = vrot.lane.b32.xlu0 %v170, 1
  %v174 = vpop.permute.xlu0 %173
  %v175 = vsel %vm124, %v172, 0.0
  %v176 = vsel %vm124, %v174, 0.0
  %177 = vset.pattern.permute.xlu0 3
  %178 = vperm.xlu0 %177, %v111
  %v179 = vpop.permute.xlu0 %178
  %v181 = vmul.f32 %v179, %v175
  %v182 = vmul.f32 %v179, %v176
  %183 = vset.pattern.permute.xlu0 4
  %184 = vperm.xlu0 %183, %v111
  %v185 = vpop.permute.xlu0 %184
  %v187 = vmul.f32 %v185, %v169
  %v188 = vmul.f32 %v185, %v170
  %v189 = vadd.f32 %v181, %v187
  %v190 = vadd.f32 %v182, %v188
  %191 = vrot.lane.b32.xlu0 %v169, 127
  %v192 = vpop.permute.xlu0 %191
  %193 = vrot.lane.b32.xlu0 %v170, 127
  %v194 = vpop.permute.xlu0 %193
  %v195 = vsel %vm151, %v192, 0.0
  %v196 = vsel %vm151, %v194, 0.0
  %197 = vset.pattern.permute.xlu0 5
  %198 = vperm.xlu0 %197, %v111
  %v199 = vpop.permute.xlu0 %198
  %v201 = vmul.f32 %v199, %v195
  %v202 = vmul.f32 %v199, %v196
  %v203 = vadd.f32 %v189, %v201
  %v204 = vadd.f32 %v190, %v202
  %205 = vset.pattern.permute.xlu0 1
  %206 = vperm.xlu0 %205, %v112
  %v207 = vpop.permute.xlu0 %206
  %v209 = vadd.f32 %v203, %v207
  %v210 = vadd.f32 %v204, %v207
  %v211 = vmax.f32 %v209, 0.0
  %v212 = vmax.f32 %v210, 0.0
  %v213 = vadd.f32 %v211, %v46
  %v214 = vadd.f32 %v212, %v95
  %215 = vrot.lane.b32.xlu0 %v213, 2
  %v216 = vpop.permute.xlu0 %215
  %217 = vrot.lane.b32.xlu0 %v214, 2
  %v218 = vpop.permute.xlu0 %217
  %v219 = vadd.s32 %v114, 4294967294
  %vm220 = vcmp.ge.s32.totalorder %v219, 0
  %vm221 = vcmp.lt.s32.totalorder %v219, 128
  %vm222 = vmand %vm220, %vm221
  %v223 = vsel %vm222, 1, 0
  %vm224 = vcmp.eq.s32.totalorder %v223, 1
  %v225 = vsel %vm224, %v216, 0.0
  %v226 = vsel %vm224, %v218, 0.0
  %227 = vset.pattern.permute.xlu0 6
  %228 = vperm.xlu0 %227, %v111
  %v229 = vpop.permute.xlu0 %228
  %v231 = vmul.f32 %v229, %v225
  %v232 = vmul.f32 %v229, %v226
  %233 = vset.pattern.permute.xlu0 7
  %234 = vperm.xlu0 %233, %v111
  %v235 = vpop.permute.xlu0 %234
  %v237 = vmul.f32 %v235, %v213
  %v238 = vmul.f32 %v235, %v214
  %v239 = vadd.f32 %v231, %v237
  %v240 = vadd.f32 %v232, %v238
  %241 = vrot.lane.b32.xlu0 %v213, 126
  %v242 = vpop.permute.xlu0 %241
  %243 = vrot.lane.b32.xlu0 %v214, 126
  %v244 = vpop.permute.xlu0 %243
  %v245 = vadd.s32 %v114, 2
  %vm246 = vcmp.ge.s32.totalorder %v245, 0
  %vm247 = vcmp.lt.s32.totalorder %v245, 128
  %vm248 = vmand %vm246, %vm247
  %v249 = vsel %vm248, 1, 0
  %vm250 = vcmp.eq.s32.totalorder %v249, 1
  %v251 = vsel %vm250, %v242, 0.0
  %v252 = vsel %vm250, %v244, 0.0
  %253 = vset.pattern.permute.xlu0 8
  %254 = vperm.xlu0 %253, %v111
  %v255 = vpop.permute.xlu0 %254
  %v257 = vmul.f32 %v255, %v251
  %v258 = vmul.f32 %v255, %v252
  %v259 = vadd.f32 %v239, %v257
  %v260 = vadd.f32 %v240, %v258
  %261 = vset.pattern.permute.xlu0 2
  %262 = vperm.xlu0 %261, %v112
  %v263 = vpop.permute.xlu0 %262
  %v265 = vadd.f32 %v259, %v263
  %v266 = vadd.f32 %v260, %v263
  %v267 = vmax.f32 %v265, 0.0
  %v268 = vmax.f32 %v266, 0.0
  %269 = vrot.lane.b32.xlu0 %v267, 2
  %v270 = vpop.permute.xlu0 %269
  %271 = vrot.lane.b32.xlu0 %v268, 2
  %v272 = vpop.permute.xlu0 %271
  %v273 = vsel %vm224, %v270, 0.0
  %v274 = vsel %vm224, %v272, 0.0
  %275 = vset.pattern.permute.xlu0 9
  %276 = vperm.xlu0 %275, %v111
  %v277 = vpop.permute.xlu0 %276
  %v279 = vmul.f32 %v277, %v273
  %v280 = vmul.f32 %v277, %v274
  %281 = vset.pattern.permute.xlu0 10
  %282 = vperm.xlu0 %281, %v111
  %v283 = vpop.permute.xlu0 %282
  %v285 = vmul.f32 %v283, %v267
  %v286 = vmul.f32 %v283, %v268
  %v287 = vadd.f32 %v279, %v285
  %v288 = vadd.f32 %v280, %v286
  %289 = vrot.lane.b32.xlu0 %v267, 126
  %v290 = vpop.permute.xlu0 %289
  %291 = vrot.lane.b32.xlu0 %v268, 126
  %v292 = vpop.permute.xlu0 %291
  %v293 = vsel %vm250, %v290, 0.0
  %v294 = vsel %vm250, %v292, 0.0
  %295 = vset.pattern.permute.xlu0 11
  %296 = vperm.xlu0 %295, %v111
  %v297 = vpop.permute.xlu0 %296
  %v299 = vmul.f32 %v297, %v293
  %v300 = vmul.f32 %v297, %v294
  %v301 = vadd.f32 %v287, %v299
  %v302 = vadd.f32 %v288, %v300
  %303 = vset.pattern.permute.xlu0 3
  %304 = vperm.xlu0 %303, %v112
  %v305 = vpop.permute.xlu0 %304
  %v307 = vadd.f32 %v301, %v305
  %v308 = vadd.f32 %v302, %v305
  %v309 = vmax.f32 %v307, 0.0
  %v310 = vmax.f32 %v308, 0.0
  %v311 = vadd.f32 %v309, %v213
  %v312 = vadd.f32 %v310, %v214
  %313 = vxpose.xlu0.b32.start [1/16] %v311, 128
  %314 = vxpose.xlu0.b32.cont [2/16] 0.0, 128
  %315 = vxpose.xlu0.b32.cont [3/16] 0.0, 128
  %316 = vxpose.xlu0.b32.cont [4/16] 0.0, 128
  %317 = vxpose.xlu0.b32.cont [5/16] 0.0, 128
  %318 = vxpose.xlu0.b32.cont [6/16] 0.0, 128
  %319 = vxpose.xlu0.b32.cont [7/16] 0.0, 128
  %320 = vxpose.xlu0.b32.cont [8/16] 0.0, 128
  %321 = vxpose.xlu0.b32.cont [9/16] 0.0, 128
  %322 = vxpose.xlu0.b32.cont [10/16] 0.0, 128
  %323 = vxpose.xlu0.b32.cont [11/16] 0.0, 128
  %324 = vxpose.xlu0.b32.cont [12/16] 0.0, 128
  %325 = vxpose.xlu0.b32.cont [13/16] 0.0, 128
  %326 = vxpose.xlu0.b32.cont [14/16] 0.0, 128
  %327 = vxpose.xlu0.b32.cont [15/16] 0.0, 128
  %328 = vxpose.xlu0.b32.end [16/16] 0.0, 128
  %v329 = vpop.trf.xlu0
  %v330 = vpop.trf.xlu0
  %v331 = vpop.trf.xlu0
  %v332 = vpop.trf.xlu0
  %v333 = vpop.trf.xlu0
  %v334 = vpop.trf.xlu0
  %v335 = vpop.trf.xlu0
  %v336 = vpop.trf.xlu0
  %v337 = vpop.trf.xlu0
  %v338 = vpop.trf.xlu0
  %v339 = vpop.trf.xlu0
  %v340 = vpop.trf.xlu0
  %v341 = vpop.trf.xlu0
  %v342 = vpop.trf.xlu0
  %v343 = vpop.trf.xlu0
  %v344 = vpop.trf.xlu0
  %vm345 = vcmask 64512
  %346 = vst.msk [vmem:[%s3] sm:$0xff] %vm345, %v329
  %347 = vst.msk [vmem:[%s3 + $0x8] sm:$0xff] %vm345, %v330
  %348 = vst.msk [vmem:[%s3 + $0x10] sm:$0xff] %vm345, %v331
  %349 = vst.msk [vmem:[%s3 + $0x18] sm:$0xff] %vm345, %v332
  %350 = vst.msk [vmem:[%s3 + $0x20] sm:$0xff] %vm345, %v333
  %351 = vst.msk [vmem:[%s3 + $0x28] sm:$0xff] %vm345, %v334
  %352 = vst.msk [vmem:[%s3 + $0x30] sm:$0xff] %vm345, %v335
  %353 = vst.msk [vmem:[%s3 + $0x38] sm:$0xff] %vm345, %v336
  %354 = vst.msk [vmem:[%s3 + $0x40] sm:$0xff] %vm345, %v337
  %355 = vst.msk [vmem:[%s3 + $0x48] sm:$0xff] %vm345, %v338
  %356 = vst.msk [vmem:[%s3 + $0x50] sm:$0xff] %vm345, %v339
  %357 = vst.msk [vmem:[%s3 + $0x58] sm:$0xff] %vm345, %v340
  %358 = vst.msk [vmem:[%s3 + $0x60] sm:$0xff] %vm345, %v341
  %359 = vst.msk [vmem:[%s3 + $0x68] sm:$0xff] %vm345, %v342
  %360 = vst.msk [vmem:[%s3 + $0x70] sm:$0xff] %vm345, %v343
  %361 = vst.msk [vmem:[%s3 + $0x78] sm:$0xff] %vm345, %v344
  %362 = vxpose.xlu0.b32.start [1/16] %v312, 128
  %363 = vxpose.xlu0.b32.cont [2/16] 0.0, 128
  %364 = vxpose.xlu0.b32.cont [3/16] 0.0, 128
  %365 = vxpose.xlu0.b32.cont [4/16] 0.0, 128
  %366 = vxpose.xlu0.b32.cont [5/16] 0.0, 128
  %367 = vxpose.xlu0.b32.cont [6/16] 0.0, 128
  %368 = vxpose.xlu0.b32.cont [7/16] 0.0, 128
  %369 = vxpose.xlu0.b32.cont [8/16] 0.0, 128
  %370 = vxpose.xlu0.b32.cont [9/16] 0.0, 128
  %371 = vxpose.xlu0.b32.cont [10/16] 0.0, 128
  %372 = vxpose.xlu0.b32.cont [11/16] 0.0, 128
  %373 = vxpose.xlu0.b32.cont [12/16] 0.0, 128
  %374 = vxpose.xlu0.b32.cont [13/16] 0.0, 128
  %375 = vxpose.xlu0.b32.cont [14/16] 0.0, 128
  %376 = vxpose.xlu0.b32.cont [15/16] 0.0, 128
  %377 = vxpose.xlu0.b32.end [16/16] 0.0, 128
  %v378 = vpop.trf.xlu0
  %v379 = vpop.trf.xlu0
  %v380 = vpop.trf.xlu0
  %v381 = vpop.trf.xlu0
  %v382 = vpop.trf.xlu0
  %v383 = vpop.trf.xlu0
  %v384 = vpop.trf.xlu0
  %v385 = vpop.trf.xlu0
  %v386 = vpop.trf.xlu0
  %v387 = vpop.trf.xlu0
  %v388 = vpop.trf.xlu0
  %v389 = vpop.trf.xlu0
  %v390 = vpop.trf.xlu0
  %v391 = vpop.trf.xlu0
  %v392 = vpop.trf.xlu0
  %v393 = vpop.trf.xlu0
  %s394 = scalar_lea.vmem %s3, 128
  %395 = vst.msk [vmem:[%s394] sm:$0xff] %vm345, %v378
  %396 = vst.msk [vmem:[%s394 + $0x8] sm:$0xff] %vm345, %v379
  %397 = vst.msk [vmem:[%s394 + $0x10] sm:$0xff] %vm345, %v380
  %398 = vst.msk [vmem:[%s394 + $0x18] sm:$0xff] %vm345, %v381
  %399 = vst.msk [vmem:[%s394 + $0x20] sm:$0xff] %vm345, %v382
  %400 = vst.msk [vmem:[%s394 + $0x28] sm:$0xff] %vm345, %v383
  %401 = vst.msk [vmem:[%s394 + $0x30] sm:$0xff] %vm345, %v384
  %402 = vst.msk [vmem:[%s394 + $0x38] sm:$0xff] %vm345, %v385
  %403 = vst.msk [vmem:[%s394 + $0x40] sm:$0xff] %vm345, %v386
  %404 = vst.msk [vmem:[%s394 + $0x48] sm:$0xff] %vm345, %v387
  %405 = vst.msk [vmem:[%s394 + $0x50] sm:$0xff] %vm345, %v388
  %406 = vst.msk [vmem:[%s394 + $0x58] sm:$0xff] %vm345, %v389
  %407 = vst.msk [vmem:[%s394 + $0x60] sm:$0xff] %vm345, %v390
  %408 = vst.msk [vmem:[%s394 + $0x68] sm:$0xff] %vm345, %v391
  %409 = vst.msk [vmem:[%s394 + $0x70] sm:$0xff] %vm345, %v392
  %410 = vst.msk [vmem:[%s394 + $0x78] sm:$0xff] %vm345, %v393
  // Predicated region
  $region14: #{depthwise_causal_convolution.1} parent=0 // pred_check
    _
  $region15: #{depthwise_causal_convolution.1} parent=0 // pred_check_branch
    %412 = sbr.rel (0) target = $region17
  $region16: #{depthwise_causal_convolution.1} parent=0 // pred_region
    _
  $region17: #{depthwise_causal_convolution.1} parent=0 // pred_fallthru
    _
  // Predicated region
  $region18: #{depthwise_causal_convolution.1} parent=0 // pred_check
    _
  $region19: #{depthwise_causal_convolution.1} parent=0 // pred_check_branch
    %414 = sbr.rel (0) target = $region21
  $region20: #{depthwise_causal_convolution.1} parent=0 // pred_region
    _
  $region21: #{depthwise_causal_convolution.1} parent=0 // pred_fallthru
    _

</llo_original>
